<compile_context>
chip_gen: v6e
topology: v6e:2x2x1
jax: 0.10.0
libtpu: 0.0.40
codegen_flags: <defaults>
</compile_context>

<pallas_src>
import functools

import numpy as np
import jax
import jax.numpy as jnp
from jax.experimental import pallas as pl
from jax.experimental.pallas import tpu as pltpu

_ROW_ALIGN = 16  # sublane alignment for packed params (safe for f32 and bf16)


def _mlp_kernel(xT_ref, tT_ref, p_ref, o_ref, *, offsets, dims, compute_dtype):
    """Fused MLP in batch-in-lanes layout.

    xT_ref : (D, TB)    activation tile, batch along lanes
    tT_ref : (1, TB)    treatment row (the torch.cat is folded in here)
    p_ref  : (P, Wmax)  packed, transposed parameters, row blocks in order
                        [W0_x^T, w0_t^T, b0^T, W1^T, b1^T, W2^T, b2^T, ...]
    o_ref  : (out, TB)  lane-dense output tile
    dims   : (D, H0, H1, ..., out)  (static)
    offsets: static row offsets of each packed block.
    """
    cd = compute_dtype
    xT = xT_ref[...]                              # (D, TB)  f32
    tT = tT_ref[...].astype(jnp.float32)          # (1, TB)

    def blk(idx, n_rows, n_cols):
        r0 = offsets[idx]
        return p_ref[r0:r0 + n_rows, 0:n_cols]

    n_layers = len(dims) - 1
    D, h0 = dims[0], dims[1]

    # Layer 0: ([X | T] @ W0 + b0)^T == W0x^T @ X^T + w0t^T * T^T + b0^T
    w0x = blk(0, h0, D)                           # (H0, D)
    w0t = blk(1, h0, 1).astype(jnp.float32)       # (H0, 1)
    b0 = blk(2, h0, 1).astype(jnp.float32)        # (H0, 1)
    h = (jnp.dot(w0x.astype(cd), xT.astype(cd),
                 preferred_element_type=jnp.float32)
         + w0t * tT                               # VPU outer product (no MXU)
         + b0)
    if n_layers > 1:
        h = jnp.maximum(h, 0.0)

    for i in range(1, n_layers):
        fan_in, fan_out = dims[i], dims[i + 1]
        w = blk(3 + 2 * (i - 1), fan_out, fan_in)            # (out, in)
        b = blk(4 + 2 * (i - 1), fan_out, 1).astype(jnp.float32)
        h = jnp.dot(w.astype(cd), h.astype(cd),
                    preferred_element_type=jnp.float32) + b  # lane-dense (out, TB)
        if i != n_layers - 1:
            h = jnp.maximum(h, 0.0)

    o_ref[...] = h.astype(o_ref.dtype)


def pack_params(params, x_feat, dtype=jnp.float32):
    """Split layer-0 weight into (X part, T part), transpose every tensor for
    the batch-in-lanes layout, and pack into a single sublane-aligned buffer.

    params: list of (W: (in, out), b: (1, out)) float32 arrays.
    Returns (packed, row_offsets, dims).
    """
    w0, b0 = params[0]
    assert w0.shape[0] == x_feat + 1, "layers_size[0] must equal x_feat + 1"
    w0 = np.asarray(w0)
    b0 = np.asarray(b0)
    blocks = [np.ascontiguousarray(w0[:x_feat].T),   # W0_x^T : (H0, D)
              np.ascontiguousarray(w0[x_feat:].T),   # w0_t^T : (H0, 1)
              np.ascontiguousarray(b0.T)]            # b0^T   : (H0, 1)
    for w, b in params[1:]:
        blocks.append(np.ascontiguousarray(np.asarray(w).T))   # (out, in)
        blocks.append(np.ascontiguousarray(np.asarray(b).T))   # (out, 1)

    width = max(blk.shape[1] for blk in blocks)
    padded, offsets, rows = [], [], 0
    for blk in blocks:
        r, c = blk.shape
        r_pad = -(-r // _ROW_ALIGN) * _ROW_ALIGN
        buf = np.zeros((r_pad, width), np.float32)
        buf[:r, :c] = blk
        offsets.append(rows)
        rows += r_pad
        padded.append(buf)

    packed = jnp.asarray(np.concatenate(padded, axis=0), dtype=dtype)
    dims = tuple([x_feat] + [int(w.shape[1]) for w, _ in params])
    return packed, tuple(offsets), dims


def _pick_batch_tile(B, block_b):
    """Lane-tile size.  Single tile for small B; otherwise a multiple of 128
    chosen so there are >= 2 grid steps (v7x megacore), capped at block_b."""
    if B <= 256:
        return B
    half = -(-B // 2)
    return int(min(block_b, max(128, (half // 128) * 128)))


def neural_network_regression_forward(X, T, packed, offsets, dims,
                                      compute_dtype=jnp.float32,
                                      block_b=16384):
    """Forward pass of the MLP.  X: (B, D) f32, T: (B,) f32.  Returns (B, out)."""
    B, D = X.shape
    assert D == dims[0]
    out_dim = dims[-1]

    # Batch-in-lanes layout (one-time XLA-side transpose / reshape).
    xT = X.T.astype(jnp.float32)          # (D, B)
    tT = T.reshape(1, B).astype(jnp.float32)

    TB = _pick_batch_tile(B, block_b)
    grid = (pl.cdiv(B, TB),)

    kernel = functools.partial(_mlp_kernel, offsets=offsets, dims=dims,
                               compute_dtype=compute_dtype)

    # VMEM sizing from the actual double-buffered tiles (+ activations + params).
    pad8 = lambda r: -(-r // 8) * 8
    pad128 = lambda c: -(-c // 128) * 128
    p_bytes = 2 if packed.dtype == jnp.bfloat16 else 4
    vmem_est = (2 * (pad8(D) + pad8(1) + pad8(out_dim)) * TB * 4      # x, t, out
                + 2 * pad8(max(dims[1:])) * TB * 4                    # activations
                + 2 * packed.shape[0] * pad128(packed.shape[1]) * p_bytes)
    vmem_limit = int(min(64 << 20, max(16 << 20, 2 * vmem_est)))

    outT = pl.pallas_call(
        kernel,
        out_shape=jax.ShapeDtypeStruct((out_dim, B), jnp.float32),
        grid=grid,
        in_specs=[
            pl.BlockSpec((D, TB), lambda i: (0, i)),        # X^T tile (pipelined)
            pl.BlockSpec((1, TB), lambda i: (0, i)),        # T^T tile (pipelined)
            pl.BlockSpec(packed.shape, lambda i: (0, 0)),   # params: resident
        ],
        out_specs=pl.BlockSpec((out_dim, TB), lambda i: (0, i)),
        compiler_params=pltpu.CompilerParams(
            dimension_semantics=("parallel",),   # batch axis -> 2 TCs on v7x
            vmem_limit_bytes=vmem_limit,
        ),
    )(xT, tT, packed)

    return outT.T                                # (B, out_dim)


def init_params(layers_size, key):
    """torch.nn.Linear default init: U(-1/sqrt(fan_in), 1/sqrt(fan_in))."""
    params = []
    for i in range(len(layers_size) - 1):
        fan_in, fan_out = layers_size[i], layers_size[i + 1]
        key, kw, kb = jax.random.split(key, 3)
        bound = 1.0 / jnp.sqrt(jnp.float32(fan_in))
        w = jax.random.uniform(kw, (fan_in, fan_out), jnp.float32, -bound, bound)
        b = jax.random.uniform(kb, (1, fan_out), jnp.float32, -bound, bound)
        params.append((w, b))
    return params


def reference_forward(X, T, params):
    """Pure-JAX reference (matches the PyTorch module exactly)."""
    h = jnp.concatenate([X, T[:, None]], axis=1).astype(jnp.float32)
    n = len(params)
    for i, (w, b) in enumerate(params):
        h = h @ w + b
        if i != n - 1:
            h = jnp.maximum(h, 0.0)
    return h


if __name__ == "__main__":
    key = jax.random.PRNGKey(0)
    kx, kt, kp, kx2, kt2 = jax.random.split(key, 5)

    # Small shapes consistent with the module: X has 4 features, so the MLP
    # input width after the T concat is 5 -> layers_size = [5, 32, 32, 1].
    batch = 8
    x_feat = 4
    layers_size = [x_feat + 1, 32, 32, 1]

    X = jax.random.normal(kx, (batch, x_feat), jnp.float32)
    T = jax.random.normal(kt, (batch,), jnp.float32)
    params = init_params(layers_size, kp)
    ref = reference_forward(X, T, params)

    # --- f32 path, single-tile grid (exact match to reference) ---
    packed_f32, offs, dims = pack_params(params, x_feat, dtype=jnp.float32)
    out = neural_network_regression_forward(X, T, packed_f32, offs, dims)
    out = jax.block_until_ready(out)
    assert out.shape == (batch, layers_size[-1])
    assert jnp.allclose(out, ref, atol=1e-5, rtol=1e-5)

    # --- f32 path, multi-tile grid (B not a multiple of TB; exercises the
    #     pipelined / masked-writeback path and the >=2-step megacore split) ---
    batch2 = 333
    X2 = jax.random.normal(kx2, (batch2, x_feat), jnp.float32)
    T2 = jax.random.normal(kt2, (batch2,), jnp.float32)
    ref2 = reference_forward(X2, T2, params)
    out2 = neural_network_regression_forward(X2, T2, packed_f32, offs, dims)
    out2 = jax.block_until_ready(out2)
    assert out2.shape == (batch2, layers_size[-1])
    assert jnp.allclose(out2, ref2, atol=1e-5, rtol=1e-5)

    # --- bf16 MXU path (f32 accumulation, f32 elementwise) ---
    packed_bf16, offs16, dims16 = pack_params(params, x_feat, dtype=jnp.bfloat16)
    out_bf16 = neural_network_regression_forward(
        X, T, packed_bf16, offs16, dims16, compute_dtype=jnp.bfloat16)
    out_bf16 = jax.block_until_ready(out_bf16)
    assert jnp.allclose(out_bf16, ref, atol=1e-1, rtol=1e-1)

    print("KERNEL_OK")
</pallas_src>

<mosaic_0001>
module attributes {stable_mosaic.version = 11 : i64} {
  func.func @_mlp_kernel(%arg0: i32, %arg1: memref<4x8xf32, #tpu.memory_space<vmem>>, %arg2: memref<1x8xf32, #tpu.memory_space<vmem>>, %arg3: memref<192x32xf32, #tpu.memory_space<vmem>>, %arg4: memref<1x8xf32, #tpu.memory_space<vmem>>) attributes {dimension_semantics = [#tpu.dimension_semantics<parallel>], iteration_bounds = array<i64: 1>, scalar_prefetch = 0 : i64, scratch_operands = 0 : i64, tpu.core_type = #tpu.core_type<tc>, window_params = [{transform_indices = @transform_0, window_bounds = array<i64: 4, 8>}, {transform_indices = @transform_1, window_bounds = array<i64: 1, 8>}, {pipeline_mode = #tpu.pipeline_mode<synchronous>, transform_indices = @transform_2, window_bounds = array<i64: 192, 32>}, {transform_indices = @transform_3, window_bounds = array<i64: 1, 8>}]} {
    %c0 = arith.constant 0 : index
    %c0_0 = arith.constant 0 : index
    %0 = vector.load %arg1[%c0, %c0_0] : memref<4x8xf32, #tpu.memory_space<vmem>>, vector<4x8xf32>
    %c0_1 = arith.constant 0 : index
    %c0_2 = arith.constant 0 : index
    %1 = vector.load %arg2[%c0_1, %c0_2] : memref<1x8xf32, #tpu.memory_space<vmem>>, vector<1x8xf32>
    %c0_3 = arith.constant 0 : index
    %c0_4 = arith.constant 0 : index
    %2 = vector.load %arg3[%c0_3, %c0_4] : memref<192x32xf32, #tpu.memory_space<vmem>>, vector<32x4xf32>
    %c32 = arith.constant 32 : index
    %c0_5 = arith.constant 0 : index
    %3 = vector.load %arg3[%c32, %c0_5] : memref<192x32xf32, #tpu.memory_space<vmem>>, vector<32x1xf32>
    %c64 = arith.constant 64 : index
    %c0_6 = arith.constant 0 : index
    %4 = vector.load %arg3[%c64, %c0_6] : memref<192x32xf32, #tpu.memory_space<vmem>>, vector<32x1xf32>
    %cst = arith.constant dense<0.000000e+00> : vector<32x8xf32>
    %5 = tpu.matmul %2, %0, %cst {dimension_numbers = #tpu.dot_dimension_numbers<[1], [0], [0], [1], [0, 0, 1, 1], [], []>} : vector<32x4xf32>, vector<4x8xf32>, vector<32x8xf32> -> vector<32x8xf32>
    %6 = vector.broadcast %3 : vector<32x1xf32> to vector<32x8xf32>
    %7 = vector.broadcast %1 : vector<1x8xf32> to vector<32x8xf32>
    %8 = arith.mulf %6, %7 : vector<32x8xf32>
    %9 = arith.addf %5, %8 : vector<32x8xf32>
    %10 = vector.broadcast %4 : vector<32x1xf32> to vector<32x8xf32>
    %11 = arith.addf %9, %10 : vector<32x8xf32>
    %cst_7 = arith.constant 0.000000e+00 : f32
    %12 = vector.broadcast %cst_7 : f32 to vector<32x8xf32>
    %13 = arith.maximumf %11, %12 : vector<32x8xf32>
    %c96 = arith.constant 96 : index
    %c0_8 = arith.constant 0 : index
    %14 = vector.load %arg3[%c96, %c0_8] : memref<192x32xf32, #tpu.memory_space<vmem>>, vector<32x32xf32>
    %c128 = arith.constant 128 : index
    %c0_9 = arith.constant 0 : index
    %15 = vector.load %arg3[%c128, %c0_9] : memref<192x32xf32, #tpu.memory_space<vmem>>, vector<32x1xf32>
    %cst_10 = arith.constant dense<0.000000e+00> : vector<32x8xf32>
    %16 = tpu.matmul %14, %13, %cst_10 {dimension_numbers = #tpu.dot_dimension_numbers<[1], [0], [0], [1], [0, 0, 1, 1], [], []>} : vector<32x32xf32>, vector<32x8xf32>, vector<32x8xf32> -> vector<32x8xf32>
    %17 = vector.broadcast %15 : vector<32x1xf32> to vector<32x8xf32>
    %18 = arith.addf %16, %17 : vector<32x8xf32>
    %cst_11 = arith.constant 0.000000e+00 : f32
    %19 = vector.broadcast %cst_11 : f32 to vector<32x8xf32>
    %20 = arith.maximumf %18, %19 : vector<32x8xf32>
    %c160 = arith.constant 160 : index
    %c0_12 = arith.constant 0 : index
    %21 = vector.load %arg3[%c160, %c0_12] : memref<192x32xf32, #tpu.memory_space<vmem>>, vector<1x32xf32>
    %c176 = arith.constant 176 : index
    %c0_13 = arith.constant 0 : index
    %22 = vector.load %arg3[%c176, %c0_13] : memref<192x32xf32, #tpu.memory_space<vmem>>, vector<1x1xf32>
    %cst_14 = arith.constant dense<0.000000e+00> : vector<1x8xf32>
    %23 = tpu.matmul %21, %20, %cst_14 {dimension_numbers = #tpu.dot_dimension_numbers<[1], [0], [0], [1], [0, 0, 1, 1], [], []>} : vector<1x32xf32>, vector<32x8xf32>, vector<1x8xf32> -> vector<1x8xf32>
    %24 = vector.broadcast %22 : vector<1x1xf32> to vector<1x8xf32>
    %25 = arith.addf %23, %24 : vector<1x8xf32>
    %c0_15 = arith.constant 0 : index
    %c0_16 = arith.constant 0 : index
    %26 = vector.load %arg4[%c0_15, %c0_16] : memref<1x8xf32, #tpu.memory_space<vmem>>, vector<1x8xf32>
    tpu.vector_store %arg4[%c0_15, %c0_16], %25 {strides = array<i32>} : memref<1x8xf32, #tpu.memory_space<vmem>>, vector<1x8xf32>,
    return
  }
  func.func @transform_0(%arg0: i32) -> (i32, i32) {
    %c0_i32 = arith.constant 0 : i32
    %c0_i32_0 = arith.constant 0 : i32
    return %c0_i32, %arg0 : i32, i32
  }
  func.func @transform_1(%arg0: i32) -> (i32, i32) {
    %c0_i32 = arith.constant 0 : i32
    %c0_i32_0 = arith.constant 0 : i32
    return %c0_i32, %arg0 : i32, i32
  }
  func.func @transform_2(%arg0: i32) -> (i32, i32) {
    %c0_i32 = arith.constant 0 : i32
    %c0_i32_0 = arith.constant 0 : i32
    %c0_i32_1 = arith.constant 0 : i32
    return %c0_i32, %c0_i32_0 : i32, i32
  }
  func.func @transform_3(%arg0: i32) -> (i32, i32) {
    %c0_i32 = arith.constant 0 : i32
    %c0_i32_0 = arith.constant 0 : i32
    return %c0_i32, %arg0 : i32, i32
  }
}

</mosaic_0001>

<llo_original>
// kernel: tpu_custom_call.1
$region0: #{tpu_custom_call.1}
  #allocation0 [shape = 'u32[]', space=smem, size = 0x4, offset = 0x4, fixed_abs, tag = 'smem constant byte address 0x4 - core index']
  #allocation1 [shape = 'u32[144,128]{1,0:T(1,128)}', space=vmem, size = 0x12000, scoped, tag = 'internal scratch']
  %s0 = inlined_call_operand.vmem [shape: f32[4,8], index: 0, kind: input, shape index: {}]
  %s1 = inlined_call_operand.vmem [shape: f32[1,8], index: 1, kind: input, shape index: {}]
  %s2 = inlined_call_operand.vmem [shape: f32[192,32], index: 2, kind: input, shape index: {}]
  %s3 = inlined_call_operand.hbm [shape: f32[1,8], index: 3, kind: output, shape index: {}]
  %s4 = sld [smem:[#allocation0]]
  $region22: #{tpu_custom_call.1} parent=0
    _
  %s6 = ssub.s32 1, %s4
  %s7 = scalar_select 0, %s6, %s4
  $region1: #{tpu_custom_call.1} parent=0
    #allocation2 [shape = 'u8[512]{0}', space=vmem, size = 0x400, scoped, tag = 'output window, operand 0, single buffered']
    #allocation3 [shape = 's32[1]{0}', space=sflag, size = 0x4, scoped, tag = 'scoped memory for tpu_custom_call.1']
    %8 = vsyncpa [#allocation3], 0
    // Predicated region
    $region2: #{tpu_custom_call.1} parent=1 // pred_check
      _
    $region3: #{tpu_custom_call.1} parent=1 // pred_check_branch
      %10 = sbr.rel (0) target = $region5
    $region4: #{tpu_custom_call.1} parent=1 // pred_region
      _
    $region5: #{tpu_custom_call.1} parent=1 // pred_fallthru
      _
    // Predicated region
    $region6: #{tpu_custom_call.1} parent=1 // pred_check
      _
    $region7: #{tpu_custom_call.1} parent=1 // pred_check_branch
      %12 = sbr.rel (0) target = $region9
    $region8: #{tpu_custom_call.1} parent=1 // pred_region
      _
    $region9: #{tpu_custom_call.1} parent=1 // pred_fallthru
      _
    // Predicated region
    $region10: #{tpu_custom_call.1} parent=1 // pred_check
      _
    $region11: #{tpu_custom_call.1} parent=1 // pred_check_branch
      %14 = sbr.rel (0) target = $region13
    $region12: #{tpu_custom_call.1} parent=1 // pred_region
      _
    $region13: #{tpu_custom_call.1} parent=1 // pred_fallthru
      _
    %v15 = vld [vmem:[%s0] sm:$0xf]
    %v16 = vld [vmem:[%s1] sm:$0x1]
    %v17 = vld [vmem:[%s2] sm:$0xff]
    %v18 = vld [vmem:[%s2 + $0x8] sm:$0xff]
    %v19 = vld [vmem:[%s2 + $0x10] sm:$0xff]
    %v20 = vld [vmem:[%s2 + $0x18] sm:$0xff]
    %v21 = vld [vmem:[%s2 + $0x20] sm:$0xff]
    %v22 = vld [vmem:[%s2 + $0x28] sm:$0xff]
    %v23 = vld [vmem:[%s2 + $0x30] sm:$0xff]
    %v24 = vld [vmem:[%s2 + $0x38] sm:$0xff]
    %v25 = vld [vmem:[%s2 + $0x40] sm:$0xff]
    %v26 = vld [vmem:[%s2 + $0x48] sm:$0xff]
    %v27 = vld [vmem:[%s2 + $0x50] sm:$0xff]
    %v28 = vld [vmem:[%s2 + $0x58] sm:$0xff]
    %30 = vset.pattern.permute.xlu0 0
    %31 = vperm.xlu0 %30, %v21
    %v32 = vpop.permute.xlu0 %31
    %35 = vset.pattern.permute.xlu0 0
    %36 = vperm.xlu0 %35, %v22
    %v37 = vpop.permute.xlu0 %36
    %40 = vset.pattern.permute.xlu0 0
    %41 = vperm.xlu0 %40, %v23
    %v42 = vpop.permute.xlu0 %41
    %45 = vset.pattern.permute.xlu0 0
    %46 = vperm.xlu0 %45, %v24
    %v47 = vpop.permute.xlu0 %46
    %v50 = vlaneseq
    %v51 = vshrl.u32 %v50, 7
    %v52 = vsub.s32 0, %v51
    %v53 = vrot.slane %v16, %v52
    %v55 = vmul.f32 %v32, %v53
    %v56 = vmul.f32 %v37, %v53
    %v57 = vmul.f32 %v42, %v53
    %v58 = vmul.f32 %v47, %v53
    %vm59 = vcmask 31744
    %v61 = vsel %vm59, %v17, 0
    %v64 = vsel %vm59, %v18, 0
    %v67 = vsel %vm59, %v19, 0
    %v70 = vsel %vm59, %v20, 0
    %vm72 = vcmask 1043456
    %v74 = vsel %vm72, %v15, 0
    %76 = vmatprep.subr.mxu0 0.0
    %77 = vmatpush1.msra.mxu0 0.0
    %78 = vmatprep.subr.mxu0 0.0
    %79 = vmatpush1.msra.mxu0 0.0
    %80 = vmatprep.subr.mxu0 0.0
    %81 = vmatpush1.msra.mxu0 0.0
    %82 = vmatprep.subr.mxu0 0.0
    %83 = vmatpush1.msra.mxu0 0.0
    %84 = vmatprep.subr.mxu0 0.0
    %85 = vmatpush1.msra.mxu0 0.0
    %86 = vmatprep.subr.mxu0 0.0
    %87 = vmatpush1.msra.mxu0 0.0
    %88 = vmatprep.subr.mxu0 0.0
    %89 = vmatpush1.msra.mxu0 0.0
    %90 = vmatprep.subr.mxu0 0.0
    %91 = vmatpush1.msra.mxu0 0.0
    %92 = vmatprep.subr.mxu0 0.0
    %93 = vmatpush1.msra.mxu0 0.0
    %94 = vmatprep.subr.mxu0 0.0
    %95 = vmatpush1.msra.mxu0 0.0
    %96 = vmatprep.subr.mxu0 0.0
    %97 = vmatpush1.msra.mxu0 0.0
    %98 = vmatprep.subr.mxu0 0.0
    %99 = vmatpush1.msra.mxu0 0.0
    %100 = vmatprep.subr.mxu0 0.0
    %101 = vmatpush1.msra.mxu0 0.0
    %102 = vmatprep.subr.mxu0 0.0
    %103 = vmatpush1.msra.mxu0 0.0
    %104 = vmatprep.subr.mxu0 0.0
    %105 = vmatpush1.msra.mxu0 0.0
    %106 = vmatprep.subr.mxu0 0.0
    %107 = vmatpush1.msra.mxu0 %v74
    %108 = vmatprep.subr.mxu0 0.0
    %109 = vmatpush2.msra.mxu0 0.0
    %110 = vmatprep.subr.mxu0 0.0
    %111 = vmatpush2.msra.mxu0 0.0
    %112 = vmatprep.subr.mxu0 0.0
    %113 = vmatpush2.msra.mxu0 0.0
    %114 = vmatprep.subr.mxu0 0.0
    %115 = vmatpush2.msra.mxu0 0.0
    %116 = vmatprep.subr.mxu0 0.0
    %117 = vmatpush2.msra.mxu0 0.0
    %118 = vmatprep.subr.mxu0 0.0
    %119 = vmatpush2.msra.mxu0 0.0
    %120 = vmatprep.subr.mxu0 0.0
    %121 = vmatpush2.msra.mxu0 0.0
    %122 = vmatprep.subr.mxu0 0.0
    %123 = vmatpush2.msra.mxu0 0.0
    %124 = vmatprep.subr.mxu0 0.0
    %125 = vmatpush2.msra.mxu0 0.0
    %126 = vmatprep.subr.mxu0 0.0
    %127 = vmatpush2.msra.mxu0 0.0
    %128 = vmatprep.subr.mxu0 0.0
    %129 = vmatpush2.msra.mxu0 0.0
    %130 = vmatprep.subr.mxu0 0.0
    %131 = vmatpush2.msra.mxu0 0.0
    %132 = vmatprep.subr.mxu0 0.0
    %133 = vmatpush2.msra.mxu0 0.0
    %134 = vmatprep.subr.mxu0 0.0
    %135 = vmatpush2.msra.mxu0 0.0
    %136 = vmatprep.subr.mxu0 0.0
    %137 = vmatpush2.msra.mxu0 0.0
    %138 = vmatprep.subr.mxu0 0.0
    %139 = vmatpush2.msra.mxu0 0.0
    %140 = vmatprep.mubr.f32.mxu0 0.0
    %141 = vmatmul.mubr.f32.gmra.mxu0 %v61
    %v142 = vpop.f32.mrf.mxu0
    %v143 = vadd.f32 %v55, %v142
    %v144 = vpop.f32.mrf.mxu0
    %145 = vmatprep.mubr.f32.mxu0 0.0
    %146 = vmatmul.mubr.f32.gmra.mxu0 %v64
    %v147 = vpop.f32.mrf.mxu0
    %v148 = vadd.f32 %v56, %v147
    %v149 = vpop.f32.mrf.mxu0
    %150 = vmatprep.mubr.f32.mxu0 0.0
    %151 = vmatmul.mubr.f32.gmra.mxu0 %v67
    %v152 = vpop.f32.mrf.mxu0
    %v153 = vadd.f32 %v57, %v152
    %v154 = vpop.f32.mrf.mxu0
    %155 = vmatprep.mubr.f32.mxu0 0.0
    %156 = vmatmul.mubr.f32.gmra.mxu0 %v70
    %v157 = vpop.f32.mrf.mxu0
    %v158 = vadd.f32 %v58, %v157
    %v159 = vpop.f32.mrf.mxu0
    %160 = vdwg.mxu0
    %162 = vset.pattern.permute.xlu0 0
    %163 = vperm.xlu0 %162, %v25
    %v164 = vpop.permute.xlu0 %163
    %167 = vset.pattern.permute.xlu0 0
    %168 = vperm.xlu0 %167, %v26
    %v169 = vpop.permute.xlu0 %168
    %172 = vset.pattern.permute.xlu0 0
    %173 = vperm.xlu0 %172, %v27
    %v174 = vpop.permute.xlu0 %173
    %177 = vset.pattern.permute.xlu0 0
    %178 = vperm.xlu0 %177, %v28
    %v179 = vpop.permute.xlu0 %178
    %v181 = vadd.f32 %v143, %v164
    %v182 = vadd.f32 %v148, %v169
    %v183 = vadd.f32 %v153, %v174
    %v184 = vadd.f32 %v158, %v179
    %v185 = vmax.f32 %v181, 0.0
    %v186 = vmax.f32 %v182, 0.0
    %v187 = vmax.f32 %v183, 0.0
    %v188 = vmax.f32 %v184, 0.0
    %v189 = vld [vmem:[%s2 + $0x60] sm:$0xff]
    %v190 = vld [vmem:[%s2 + $0x68] sm:$0xff]
    %v191 = vld [vmem:[%s2 + $0x70] sm:$0xff]
    %v192 = vld [vmem:[%s2 + $0x78] sm:$0xff]
    %v193 = vld [vmem:[%s2 + $0x80] sm:$0xff]
    %v194 = vld [vmem:[%s2 + $0x88] sm:$0xff]
    %v195 = vld [vmem:[%s2 + $0x90] sm:$0xff]
    %v196 = vld [vmem:[%s2 + $0x98] sm:$0xff]
    %198 = vset.pattern.permute.xlu0 0
    %199 = vperm.xlu0 %198, %v193
    %v200 = vpop.permute.xlu0 %199
    %203 = vset.pattern.permute.xlu0 0
    %204 = vperm.xlu0 %203, %v194
    %v205 = vpop.permute.xlu0 %204
    %208 = vset.pattern.permute.xlu0 0
    %209 = vperm.xlu0 %208, %v195
    %v210 = vpop.permute.xlu0 %209
    %213 = vset.pattern.permute.xlu0 0
    %214 = vperm.xlu0 %213, %v196
    %v215 = vpop.permute.xlu0 %214
    %vm217 = vcmask 261120
    %v219 = vsel %vm217, %v189, 0
    %v222 = vsel %vm217, %v190, 0
    %v225 = vsel %vm217, %v191, 0
    %v228 = vsel %vm217, %v192, 0
    %230 = vmatprep.subr.mxu0 0.0
    %231 = vmatpush1.msra.mxu0 0.0
    %232 = vmatprep.subr.mxu0 0.0
    %233 = vmatpush1.msra.mxu0 0.0
    %234 = vmatprep.subr.mxu0 0.0
    %235 = vmatpush1.msra.mxu0 0.0
    %236 = vmatprep.subr.mxu0 0.0
    %237 = vmatpush1.msra.mxu0 0.0
    %238 = vmatprep.subr.mxu0 0.0
    %239 = vmatpush1.msra.mxu0 0.0
    %240 = vmatprep.subr.mxu0 0.0
    %241 = vmatpush1.msra.mxu0 0.0
    %242 = vmatprep.subr.mxu0 0.0
    %243 = vmatpush1.msra.mxu0 0.0
    %244 = vmatprep.subr.mxu0 0.0
    %245 = vmatpush1.msra.mxu0 0.0
    %246 = vmatprep.subr.mxu0 0.0
    %247 = vmatpush1.msra.mxu0 0.0
    %248 = vmatprep.subr.mxu0 0.0
    %249 = vmatpush1.msra.mxu0 0.0
    %250 = vmatprep.subr.mxu0 0.0
    %251 = vmatpush1.msra.mxu0 0.0
    %252 = vmatprep.subr.mxu0 0.0
    %253 = vmatpush1.msra.mxu0 0.0
    %254 = vmatprep.subr.mxu0 0.0
    %255 = vmatpush1.msra.mxu0 %v188
    %256 = vmatprep.subr.mxu0 0.0
    %257 = vmatpush1.msra.mxu0 %v187
    %258 = vmatprep.subr.mxu0 0.0
    %259 = vmatpush1.msra.mxu0 %v186
    %260 = vmatprep.subr.mxu0 0.0
    %261 = vmatpush1.msra.mxu0 %v185
    %262 = vmatprep.subr.mxu0 0.0
    %263 = vmatpush2.msra.mxu0 0.0
    %264 = vmatprep.subr.mxu0 0.0
    %265 = vmatpush2.msra.mxu0 0.0
    %266 = vmatprep.subr.mxu0 0.0
    %267 = vmatpush2.msra.mxu0 0.0
    %268 = vmatprep.subr.mxu0 0.0
    %269 = vmatpush2.msra.mxu0 0.0
    %270 = vmatprep.subr.mxu0 0.0
    %271 = vmatpush2.msra.mxu0 0.0
    %272 = vmatprep.subr.mxu0 0.0
    %273 = vmatpush2.msra.mxu0 0.0
    %274 = vmatprep.subr.mxu0 0.0
    %275 = vmatpush2.msra.mxu0 0.0
    %276 = vmatprep.subr.mxu0 0.0
    %277 = vmatpush2.msra.mxu0 0.0
    %278 = vmatprep.subr.mxu0 0.0
    %279 = vmatpush2.msra.mxu0 0.0
    %280 = vmatprep.subr.mxu0 0.0
    %281 = vmatpush2.msra.mxu0 0.0
    %282 = vmatprep.subr.mxu0 0.0
    %283 = vmatpush2.msra.mxu0 0.0
    %284 = vmatprep.subr.mxu0 0.0
    %285 = vmatpush2.msra.mxu0 0.0
    %286 = vmatprep.subr.mxu0 0.0
    %287 = vmatpush2.msra.mxu0 0.0
    %288 = vmatprep.subr.mxu0 0.0
    %289 = vmatpush2.msra.mxu0 0.0
    %290 = vmatprep.subr.mxu0 0.0
    %291 = vmatpush2.msra.mxu0 0.0
    %292 = vmatprep.subr.mxu0 0.0
    %293 = vmatpush2.msra.mxu0 0.0
    %294 = vmatprep.mubr.f32.mxu0 0.0
    %295 = vmatmul.mubr.f32.gmra.mxu0 %v219
    %v296 = vpop.f32.mrf.mxu0
    %v297 = vadd.f32 %v200, %v296
    %v298 = vpop.f32.mrf.mxu0
    %299 = vmatprep.mubr.f32.mxu0 0.0
    %300 = vmatmul.mubr.f32.gmra.mxu0 %v222
    %v301 = vpop.f32.mrf.mxu0
    %v302 = vadd.f32 %v205, %v301
    %v303 = vpop.f32.mrf.mxu0
    %304 = vmatprep.mubr.f32.mxu0 0.0
    %305 = vmatmul.mubr.f32.gmra.mxu0 %v225
    %v306 = vpop.f32.mrf.mxu0
    %v307 = vadd.f32 %v210, %v306
    %v308 = vpop.f32.mrf.mxu0
    %309 = vmatprep.mubr.f32.mxu0 0.0
    %310 = vmatmul.mubr.f32.gmra.mxu0 %v228
    %v311 = vpop.f32.mrf.mxu0
    %v312 = vadd.f32 %v215, %v311
    %v313 = vpop.f32.mrf.mxu0
    %314 = vdwg.mxu0
    %v315 = vmax.f32 %v297, 0.0
    %v316 = vmax.f32 %v302, 0.0
    %v317 = vmax.f32 %v307, 0.0
    %v318 = vmax.f32 %v312, 0.0
    %v319 = vld [vmem:[%s2 + $0xa0] sm:$0x1]
    %v320 = vld [vmem:[%s2 + $0xb0] sm:$0x1]
    %322 = vset.pattern.permute.xlu0 0
    %323 = vperm.xlu0 %322, %v320
    %v324 = vpop.permute.xlu0 %323
    %v327 = vsel %vm217, %v319, 0
    %329 = vmatprep.subr.mxu0 0.0
    %330 = vmatpush1.msra.mxu0 0.0
    %331 = vmatprep.subr.mxu0 0.0
    %332 = vmatpush1.msra.mxu0 0.0
    %333 = vmatprep.subr.mxu0 0.0
    %334 = vmatpush1.msra.mxu0 0.0
    %335 = vmatprep.subr.mxu0 0.0
    %336 = vmatpush1.msra.mxu0 0.0
    %337 = vmatprep.subr.mxu0 0.0
    %338 = vmatpush1.msra.mxu0 0.0
    %339 = vmatprep.subr.mxu0 0.0
    %340 = vmatpush1.msra.mxu0 0.0
    %341 = vmatprep.subr.mxu0 0.0
    %342 = vmatpush1.msra.mxu0 0.0
    %343 = vmatprep.subr.mxu0 0.0
    %344 = vmatpush1.msra.mxu0 0.0
    %345 = vmatprep.subr.mxu0 0.0
    %346 = vmatpush1.msra.mxu0 0.0
    %347 = vmatprep.subr.mxu0 0.0
    %348 = vmatpush1.msra.mxu0 0.0
    %349 = vmatprep.subr.mxu0 0.0
    %350 = vmatpush1.msra.mxu0 0.0
    %351 = vmatprep.subr.mxu0 0.0
    %352 = vmatpush1.msra.mxu0 0.0
    %353 = vmatprep.subr.mxu0 0.0
    %354 = vmatpush1.msra.mxu0 %v318
    %355 = vmatprep.subr.mxu0 0.0
    %356 = vmatpush1.msra.mxu0 %v317
    %357 = vmatprep.subr.mxu0 0.0
    %358 = vmatpush1.msra.mxu0 %v316
    %359 = vmatprep.subr.mxu0 0.0
    %360 = vmatpush1.msra.mxu0 %v315
    %361 = vmatprep.subr.mxu0 0.0
    %362 = vmatpush2.msra.mxu0 0.0
    %363 = vmatprep.subr.mxu0 0.0
    %364 = vmatpush2.msra.mxu0 0.0
    %365 = vmatprep.subr.mxu0 0.0
    %366 = vmatpush2.msra.mxu0 0.0
    %367 = vmatprep.subr.mxu0 0.0
    %368 = vmatpush2.msra.mxu0 0.0
    %369 = vmatprep.subr.mxu0 0.0
    %370 = vmatpush2.msra.mxu0 0.0
    %371 = vmatprep.subr.mxu0 0.0
    %372 = vmatpush2.msra.mxu0 0.0
    %373 = vmatprep.subr.mxu0 0.0
    %374 = vmatpush2.msra.mxu0 0.0
    %375 = vmatprep.subr.mxu0 0.0
    %376 = vmatpush2.msra.mxu0 0.0
    %377 = vmatprep.subr.mxu0 0.0
    %378 = vmatpush2.msra.mxu0 0.0
    %379 = vmatprep.subr.mxu0 0.0
    %380 = vmatpush2.msra.mxu0 0.0
    %381 = vmatprep.subr.mxu0 0.0
    %382 = vmatpush2.msra.mxu0 0.0
    %383 = vmatprep.subr.mxu0 0.0
    %384 = vmatpush2.msra.mxu0 0.0
    %385 = vmatprep.subr.mxu0 0.0
    %386 = vmatpush2.msra.mxu0 0.0
    %387 = vmatprep.subr.mxu0 0.0
    %388 = vmatpush2.msra.mxu0 0.0
    %389 = vmatprep.subr.mxu0 0.0
    %390 = vmatpush2.msra.mxu0 0.0
    %391 = vmatprep.subr.mxu0 0.0
    %392 = vmatpush2.msra.mxu0 0.0
    %393 = vmatprep.mubr.f32.mxu0 0.0
    %394 = vmatmul.mubr.f32.gmra.mxu0 %v327
    %v395 = vpop.f32.mrf.mxu0
    %v396 = vadd.f32 %v324, %v395
    %v397 = vpop.f32.mrf.mxu0
    %398 = vdwg.mxu0
    %vm399 = vcmask 57344
    %400 = vst.msk [vmem:[#allocation2] sm:$0x1] %vm399, %v396
    // Predicated region
    $region14: #{tpu_custom_call.1} parent=1 // pred_check
      _
    $region15: #{tpu_custom_call.1} parent=1 // pred_check_branch
      %402 = sbr.rel (0) target = $region17
    $region16: #{tpu_custom_call.1} parent=1 // pred_region
      %s404 = ssub.s32 16, 16
      %405 = vsyncadd [#allocation3], %s404
      %s407 = sshll.u32 [#allocation2], 4
      %s408 = int_to_ptr.vmem [resolvable:$true] %s407
      %410 = dma.vmem_to_hbm [thread:$0]  %s408, 16, %s3, [#allocation3]
    $region17: #{tpu_custom_call.1} parent=1 // pred_fallthru
      _
    // Predicated region
    $region18: #{tpu_custom_call.1} parent=1 // pred_check
      _
    $region19: #{tpu_custom_call.1} parent=1 // pred_check_branch
      %412 = sbr.rel (0) target = $region21
    $region20: #{tpu_custom_call.1} parent=1 // pred_region
      %413 = dma.done [#allocation3], 16
    $region21: #{tpu_custom_call.1} parent=1 // pred_fallthru
      _
    %414 = vsyncpa [#allocation3], 1

</llo_original>
